<compile_context>
chip_gen: v5e
topology: v5e:2x2
jax: 0.10.0
libtpu: 0.0.40
codegen_flags: <defaults>
</compile_context>

<pallas_src>
import jax
import jax.numpy as jnp
from jax.experimental import pallas as pl
from jax.experimental.pallas import tpu as pltpu

HIDDEN_SIZE = 64
SUBLANE = 8


def _round_up(x, m):
    return ((x + m - 1) // m) * m


def ppo_actor_kernel(x_ref, w1_ref, b1_ref, w2_ref, b2_ref, w3t_ref, b3_ref,
                     o_ref):
    state_n = w1_ref.shape[0]
    action_n = w3t_ref.shape[0]

    x = x_ref[...]                      # (tb, state_n) f32
    w1 = w1_ref[...]                    # (state_n, hidden)

    # Layer 1: K == state_n (tiny) -> broadcast-FMAs on the VPU (no MXU
    # round trip for a K=3 contraction).  Static unroll, state_n is small.
    h = b1_ref[...]                     # (1, hidden) -> broadcasts on first add
    for k in range(state_n):
        h = h + x[:, k:k + 1] * w1[k:k + 1, :]
    h = jnp.maximum(h, 0.0)

    # Layer 2: 64x64 contraction on the MXU, full f32 precision.
    h = jnp.dot(h, w2_ref[...],
                preferred_element_type=jnp.float32,
                precision=jax.lax.Precision.HIGHEST)
    h = jnp.maximum(h + b2_ref[...], 0.0)

    # Layer 3: N == action_n (tiny) -> per-output-column VPU multiply + XLU
    # lane reduce; output stays action_n lanes wide (no zero-lane writeback).
    w3t = w3t_ref[...]                  # (action_n, hidden)
    b3 = b3_ref[...]                    # (1, action_n)
    for a in range(action_n):
        col = jnp.sum(h * w3t[a:a + 1, :], axis=-1, keepdims=True)
        col = col + b3[:, a:a + 1]
        o_ref[:, a:a + 1] = col.astype(o_ref.dtype)


def init_params(key, state_n, action_n, hidden=HIDDEN_SIZE):
    """Deterministic init mimicking torch.nn.Linear (uniform +-1/sqrt(fan_in))."""
    ks = jax.random.split(key, 6)

    def linear(kw, kb, fan_in, fan_out):
        bound = 1.0 / jnp.sqrt(fan_in)
        w = jax.random.uniform(kw, (fan_in, fan_out), jnp.float32, -bound, bound)
        b = jax.random.uniform(kb, (fan_out,), jnp.float32, -bound, bound)
        return w, b

    w1, b1 = linear(ks[0], ks[1], state_n, hidden)
    w2, b2 = linear(ks[2], ks[3], hidden, hidden)
    w3, b3 = linear(ks[4], ks[5], hidden, action_n)
    # logstd exists in the module but is not used in forward(); kept for parity.
    logstd = jnp.zeros((action_n,), jnp.float32)
    return {"w1": w1, "b1": b1, "w2": w2, "b2": b2, "w3": w3, "b3": b3,
            "logstd": logstd}


def prepare_params(params):
    """One-time kernel-layout prep (no padding): 2-D biases, transposed w3."""
    return {
        "w1": params["w1"].astype(jnp.float32),                 # (state_n, hidden)
        "b1": params["b1"].reshape(1, -1).astype(jnp.float32),  # (1, hidden)
        "w2": params["w2"].astype(jnp.float32),                 # (hidden, hidden)
        "b2": params["b2"].reshape(1, -1).astype(jnp.float32),  # (1, hidden)
        "w3t": params["w3"].T.astype(jnp.float32),              # (action_n, hidden)
        "b3": params["b3"].reshape(1, -1).astype(jnp.float32),  # (1, action_n)
    }


def make_ppo_actor_forward(state_n, action_n, hidden=HIDDEN_SIZE,
                           tile_batch=2048):
    """Returns forward(x, prepared_params) -> (batch, action_n) float32."""

    def forward(x, p):
        batch = x.shape[0]
        x = x.astype(jnp.float32)

        # Batch tile: multiple of 8 sublanes, capped by tile_batch, and sized
        # to ceil(batch/2) so there are >= 2 grid steps whenever batch > 8
        # (lets v7x's two TensorCores both work; no-op on v5e/v6e).
        half = _round_up(-(-batch // 2), SUBLANE)
        tb = max(SUBLANE, min(_round_up(tile_batch, SUBLANE), half))
        bp = _round_up(batch, tb)
        if bp != batch:
            # Row-only pad (state_n columns are streamed as-is); cheap.
            x = jnp.pad(x, ((0, bp - batch), (0, 0)))

        grid = (bp // tb,)
        out = pl.pallas_call(
            ppo_actor_kernel,
            out_shape=jax.ShapeDtypeStruct((bp, action_n), jnp.float32),
            grid=grid,
            in_specs=[
                pl.BlockSpec((tb, state_n), lambda i: (i, 0)),       # x (tiled)
                pl.BlockSpec((state_n, hidden), lambda i: (0, 0)),   # w1 resident
                pl.BlockSpec((1, hidden), lambda i: (0, 0)),         # b1
                pl.BlockSpec((hidden, hidden), lambda i: (0, 0)),    # w2
                pl.BlockSpec((1, hidden), lambda i: (0, 0)),         # b2
                pl.BlockSpec((action_n, hidden), lambda i: (0, 0)),  # w3^T
                pl.BlockSpec((1, action_n), lambda i: (0, 0)),       # b3
            ],
            out_specs=pl.BlockSpec((tb, action_n), lambda i: (i, 0)),
            compiler_params=pltpu.CompilerParams(
                dimension_semantics=("parallel",),
                vmem_limit_bytes=32 * 1024 * 1024),
        )(x, p["w1"], p["b1"], p["w2"], p["b2"], p["w3t"], p["b3"])

        return out if bp == batch else out[:batch]

    return forward


def reference_forward(x, p):
    h = jnp.maximum(x @ p["w1"] + p["b1"], 0.0)
    h = jnp.maximum(h @ p["w2"] + p["b2"], 0.0)
    return h @ p["w3"] + p["b3"]


if __name__ == "__main__":
    # Pendulum-v1: state_n=3, action_n=1.
    STATE_N, ACTION_N, BATCH = 3, 1, 8

    key = jax.random.PRNGKey(0)
    k_params, k_x, k_x2 = jax.random.split(key, 3)
    params = init_params(k_params, STATE_N, ACTION_N)
    prepared = prepare_params(params)

    # --- small-batch check (single grid step), matches the original module use
    x = jax.random.normal(k_x, (BATCH, STATE_N), jnp.float32)
    fwd = jax.jit(make_ppo_actor_forward(STATE_N, ACTION_N))
    y = fwd(x, prepared)
    jax.block_until_ready(y)
    y_ref = reference_forward(x, params)
    assert y.shape == (BATCH, ACTION_N), y.shape
    assert jnp.allclose(y, y_ref, atol=1e-4, rtol=1e-4), "mismatch vs reference"

    # --- multi-tile check: exercises the batch grid (grid > 1) + row padding
    BATCH2 = 520
    x2 = jax.random.normal(k_x2, (BATCH2, STATE_N), jnp.float32)
    fwd_tiled = jax.jit(make_ppo_actor_forward(STATE_N, ACTION_N,
                                               tile_batch=256))
    y2 = fwd_tiled(x2, prepared)
    jax.block_until_ready(y2)
    y2_ref = reference_forward(x2, params)
    assert y2.shape == (BATCH2, ACTION_N), y2.shape
    assert jnp.allclose(y2, y2_ref, atol=1e-4, rtol=1e-4), "mismatch (tiled)"

    print("KERNEL_OK")
</pallas_src>

<mosaic_0001>
module attributes {stable_mosaic.version = 11 : i64} {
  func.func @ppo_actor_kernel(%arg0: i32, %arg1: memref<8x3xf32, #tpu.memory_space<vmem>>, %arg2: memref<3x64xf32, #tpu.memory_space<vmem>>, %arg3: memref<1x64xf32, #tpu.memory_space<vmem>>, %arg4: memref<64x64xf32, #tpu.memory_space<vmem>>, %arg5: memref<1x64xf32, #tpu.memory_space<vmem>>, %arg6: memref<1x64xf32, #tpu.memory_space<vmem>>, %arg7: memref<1x1xf32, #tpu.memory_space<vmem>>, %arg8: memref<8x1xf32, #tpu.memory_space<vmem>>) attributes {dimension_semantics = [#tpu.dimension_semantics<parallel>], iteration_bounds = array<i64: 1>, scalar_prefetch = 0 : i64, scratch_operands = 0 : i64, tpu.core_type = #tpu.core_type<tc>, window_params = [{transform_indices = @transform_0, window_bounds = array<i64: 8, 3>}, {pipeline_mode = #tpu.pipeline_mode<synchronous>, transform_indices = @transform_1, window_bounds = array<i64: 3, 64>}, {pipeline_mode = #tpu.pipeline_mode<synchronous>, transform_indices = @transform_2, window_bounds = array<i64: 1, 64>}, {pipeline_mode = #tpu.pipeline_mode<synchronous>, transform_indices = @transform_3, window_bounds = array<i64: 64, 64>}, {pipeline_mode = #tpu.pipeline_mode<synchronous>, transform_indices = @transform_4, window_bounds = array<i64: 1, 64>}, {pipeline_mode = #tpu.pipeline_mode<synchronous>, transform_indices = @transform_5, window_bounds = array<i64: 1, 64>}, {pipeline_mode = #tpu.pipeline_mode<synchronous>, transform_indices = @transform_6, window_bounds = array<i64: 1, 1>}, {transform_indices = @transform_7, window_bounds = array<i64: 8, 1>}]} {
    %c0 = arith.constant 0 : index
    %c0_0 = arith.constant 0 : index
    %0 = vector.load %arg1[%c0, %c0_0] : memref<8x3xf32, #tpu.memory_space<vmem>>, vector<8x3xf32>
    %c0_1 = arith.constant 0 : index
    %c0_2 = arith.constant 0 : index
    %1 = vector.load %arg2[%c0_1, %c0_2] : memref<3x64xf32, #tpu.memory_space<vmem>>, vector<3x64xf32>
    %c0_3 = arith.constant 0 : index
    %c0_4 = arith.constant 0 : index
    %2 = vector.load %arg3[%c0_3, %c0_4] : memref<1x64xf32, #tpu.memory_space<vmem>>, vector<1x64xf32>
    %3 = vector.extract_strided_slice %0 {offsets = [0, 0], sizes = [8, 1], strides = [1, 1]} : vector<8x3xf32> to vector<8x1xf32>
    %4 = vector.extract_strided_slice %1 {offsets = [0, 0], sizes = [1, 64], strides = [1, 1]} : vector<3x64xf32> to vector<1x64xf32>
    %5 = vector.broadcast %3 : vector<8x1xf32> to vector<8x64xf32>
    %6 = vector.broadcast %4 : vector<1x64xf32> to vector<8x64xf32>
    %7 = arith.mulf %5, %6 : vector<8x64xf32>
    %8 = vector.broadcast %2 : vector<1x64xf32> to vector<8x64xf32>
    %9 = arith.addf %8, %7 : vector<8x64xf32>
    %10 = vector.extract_strided_slice %0 {offsets = [0, 1], sizes = [8, 1], strides = [1, 1]} : vector<8x3xf32> to vector<8x1xf32>
    %11 = vector.extract_strided_slice %1 {offsets = [1, 0], sizes = [1, 64], strides = [1, 1]} : vector<3x64xf32> to vector<1x64xf32>
    %12 = vector.broadcast %10 : vector<8x1xf32> to vector<8x64xf32>
    %13 = vector.broadcast %11 : vector<1x64xf32> to vector<8x64xf32>
    %14 = arith.mulf %12, %13 : vector<8x64xf32>
    %15 = arith.addf %9, %14 : vector<8x64xf32>
    %16 = vector.extract_strided_slice %0 {offsets = [0, 2], sizes = [8, 1], strides = [1, 1]} : vector<8x3xf32> to vector<8x1xf32>
    %17 = vector.extract_strided_slice %1 {offsets = [2, 0], sizes = [1, 64], strides = [1, 1]} : vector<3x64xf32> to vector<1x64xf32>
    %18 = vector.broadcast %16 : vector<8x1xf32> to vector<8x64xf32>
    %19 = vector.broadcast %17 : vector<1x64xf32> to vector<8x64xf32>
    %20 = arith.mulf %18, %19 : vector<8x64xf32>
    %21 = arith.addf %15, %20 : vector<8x64xf32>
    %cst = arith.constant 0.000000e+00 : f32
    %22 = vector.broadcast %cst : f32 to vector<8x64xf32>
    %23 = arith.maximumf %21, %22 : vector<8x64xf32>
    %c0_5 = arith.constant 0 : index
    %c0_6 = arith.constant 0 : index
    %24 = vector.load %arg4[%c0_5, %c0_6] : memref<64x64xf32, #tpu.memory_space<vmem>>, vector<64x64xf32>
    %cst_7 = arith.constant dense<0.000000e+00> : vector<8x64xf32>
    %25 = tpu.matmul %23, %24, %cst_7 {dimension_numbers = #tpu.dot_dimension_numbers<[1], [0], [0], [1], [0, 0, 1, 1], [], []>, precision = #tpu.contract_precision<fp32>} : vector<8x64xf32>, vector<64x64xf32>, vector<8x64xf32> -> vector<8x64xf32>
    %c0_8 = arith.constant 0 : index
    %c0_9 = arith.constant 0 : index
    %26 = vector.load %arg5[%c0_8, %c0_9] : memref<1x64xf32, #tpu.memory_space<vmem>>, vector<1x64xf32>
    %27 = vector.broadcast %26 : vector<1x64xf32> to vector<8x64xf32>
    %28 = arith.addf %25, %27 : vector<8x64xf32>
    %cst_10 = arith.constant 0.000000e+00 : f32
    %29 = vector.broadcast %cst_10 : f32 to vector<8x64xf32>
    %30 = arith.maximumf %28, %29 : vector<8x64xf32>
    %c0_11 = arith.constant 0 : index
    %c0_12 = arith.constant 0 : index
    %31 = vector.load %arg6[%c0_11, %c0_12] : memref<1x64xf32, #tpu.memory_space<vmem>>, vector<1x64xf32>
    %c0_13 = arith.constant 0 : index
    %c0_14 = arith.constant 0 : index
    %32 = vector.load %arg7[%c0_13, %c0_14] : memref<1x1xf32, #tpu.memory_space<vmem>>, vector<1x1xf32>
    %33 = vector.broadcast %31 : vector<1x64xf32> to vector<8x64xf32>
    %34 = arith.mulf %30, %33 : vector<8x64xf32>
    %cst_15 = arith.constant dense<0.000000e+00> : vector<8xf32>
    %35 = vector.multi_reduction <add>, %34, %cst_15 [1] : vector<8x64xf32> to vector<8xf32>
    %36 = vector.shape_cast %35 : vector<8xf32> to vector<8x1xf32>
    %37 = vector.broadcast %32 : vector<1x1xf32> to vector<8x1xf32>
    %38 = arith.addf %36, %37 : vector<8x1xf32>
    %c0_16 = arith.constant 0 : index
    %c0_17 = arith.constant 0 : index
    %39 = vector.load %arg8[%c0_16, %c0_17] : memref<8x1xf32, #tpu.memory_space<vmem>>, vector<8x1xf32>
    tpu.vector_store %arg8[%c0_16, %c0_17], %38 {strides = array<i32>} : memref<8x1xf32, #tpu.memory_space<vmem>>, vector<8x1xf32>,
    return
  }
  func.func @transform_0(%arg0: i32) -> (i32, i32) {
    %c0_i32 = arith.constant 0 : i32
    %c0_i32_0 = arith.constant 0 : i32
    return %arg0, %c0_i32 : i32, i32
  }
  func.func @transform_1(%arg0: i32) -> (i32, i32) {
    %c0_i32 = arith.constant 0 : i32
    %c0_i32_0 = arith.constant 0 : i32
    %c0_i32_1 = arith.constant 0 : i32
    return %c0_i32, %c0_i32_0 : i32, i32
  }
  func.func @transform_2(%arg0: i32) -> (i32, i32) {
    %c0_i32 = arith.constant 0 : i32
    %c0_i32_0 = arith.constant 0 : i32
    %c0_i32_1 = arith.constant 0 : i32
    return %c0_i32, %c0_i32_0 : i32, i32
  }
  func.func @transform_3(%arg0: i32) -> (i32, i32) {
    %c0_i32 = arith.constant 0 : i32
    %c0_i32_0 = arith.constant 0 : i32
    %c0_i32_1 = arith.constant 0 : i32
    return %c0_i32, %c0_i32_0 : i32, i32
  }
  func.func @transform_4(%arg0: i32) -> (i32, i32) {
    %c0_i32 = arith.constant 0 : i32
    %c0_i32_0 = arith.constant 0 : i32
    %c0_i32_1 = arith.constant 0 : i32
    return %c0_i32, %c0_i32_0 : i32, i32
  }
  func.func @transform_5(%arg0: i32) -> (i32, i32) {
    %c0_i32 = arith.constant 0 : i32
    %c0_i32_0 = arith.constant 0 : i32
    %c0_i32_1 = arith.constant 0 : i32
    return %c0_i32, %c0_i32_0 : i32, i32
  }
  func.func @transform_6(%arg0: i32) -> (i32, i32) {
    %c0_i32 = arith.constant 0 : i32
    %c0_i32_0 = arith.constant 0 : i32
    %c0_i32_1 = arith.constant 0 : i32
    return %c0_i32, %c0_i32_0 : i32, i32
  }
  func.func @transform_7(%arg0: i32) -> (i32, i32) {
    %c0_i32 = arith.constant 0 : i32
    %c0_i32_0 = arith.constant 0 : i32
    return %arg0, %c0_i32 : i32, i32
  }
}

</mosaic_0001>

<llo_original>
// kernel: forward.1
$region0: #{forward.1}
  #allocation0 [shape = 'u32[]', space=smem, size = 0x4, offset = 0x4, fixed_abs, tag = 'smem constant byte address 0x4 - core index']
  #allocation1 [shape = 'u32[72,128]{1,0:T(1,128)}', space=vmem, size = 0x9000, scoped, tag = 'internal scratch']
  #allocation2 [shape = 'f32[1,1]{1,0:T(1,128)S(1)}', space=vmem, size = 0x200, scoped, tag = 'scoped memory for forward.1']
  %s0 = inlined_call_operand.vmem [shape: f32[8,3], index: 0, kind: input, shape index: {}]
  %s1 = inlined_call_operand.vmem [shape: f32[3,64], index: 1, kind: input, shape index: {}]
  %s2 = inlined_call_operand.vmem [shape: f32[1,64], index: 2, kind: input, shape index: {}]
  %s3 = inlined_call_operand.hbm [shape: f32[64,64], index: 3, kind: input, shape index: {}]
  %s4 = inlined_call_operand.vmem [shape: f32[1,64], index: 4, kind: input, shape index: {}]
  %s5 = inlined_call_operand.vmem [shape: f32[1,64], index: 5, kind: input, shape index: {}]
  %s6 = inlined_call_operand.<no memory space> [shape: f32[1,1], index: 6, kind: input, shape index: {}]
  %s7 = inlined_call_operand.vmem [shape: f32[8,1], index: 7, kind: output, shape index: {}]
  %s8 = sld [smem:[#allocation0]]
  $region42: #{forward.1} parent=0
    _
  %s10 = ssub.s32 1, %s8
  %s11 = scalar_select 0, %s10, %s8
  %v12 = vstv %s6
  %13 = vst [vmem:[#allocation2] sm:$0x1] %v12
  $region1: #{forward.1} parent=0
    #allocation3 [shape = 'u8[32768]{0}', space=vmem, size = 0x8000, scoped, tag = 'input window, operand 3, single buffered']
    #allocation4 [shape = 's32[1]{0}', space=sflag, size = 0x4, scoped, tag = 'scoped memory for forward.1']
    %14 = vsyncpa [#allocation4], 0
    // Predicated region
    $region2: #{forward.1} parent=1 // pred_check
      _
    $region3: #{forward.1} parent=1 // pred_check_branch
      %16 = sbr.rel (0) target = $region5
    $region4: #{forward.1} parent=1 // pred_region
      _
    $region5: #{forward.1} parent=1 // pred_fallthru
      _
    // Predicated region
    $region6: #{forward.1} parent=1 // pred_check
      _
    $region7: #{forward.1} parent=1 // pred_check_branch
      %18 = sbr.rel (0) target = $region9
    $region8: #{forward.1} parent=1 // pred_region
      _
    $region9: #{forward.1} parent=1 // pred_fallthru
      _
    // Predicated region
    $region10: #{forward.1} parent=1 // pred_check
      _
    $region11: #{forward.1} parent=1 // pred_check_branch
      %20 = sbr.rel (0) target = $region13
    $region12: #{forward.1} parent=1 // pred_region
      _
    $region13: #{forward.1} parent=1 // pred_fallthru
      _
    // Predicated region
    $region14: #{forward.1} parent=1 // pred_check
      _
    $region15: #{forward.1} parent=1 // pred_check_branch
      %22 = sbr.rel (0) target = $region17
    $region16: #{forward.1} parent=1 // pred_region
      %24 = vsyncadd [#allocation4], 0
      %s25 = sshll.u32 %s3, 4
      %s26 = int_to_ptr.hbm [resolvable:$true] %s25
      %s27 = sshll.u32 [#allocation3], 4
      %s28 = int_to_ptr.vmem [resolvable:$true] %s27
      %33 = dma.hbm_to_vmem [thread:$0]  %s26, 1024, %s28, [#allocation4], 128, 128, 8
    $region17: #{forward.1} parent=1 // pred_fallthru
      _
    // Predicated region
    $region18: #{forward.1} parent=1 // pred_check
      _
    $region19: #{forward.1} parent=1 // pred_check_branch
      %35 = sbr.rel (0) target = $region21
    $region20: #{forward.1} parent=1 // pred_region
      _
    $region21: #{forward.1} parent=1 // pred_fallthru
      _
    // Predicated region
    $region22: #{forward.1} parent=1 // pred_check
      _
    $region23: #{forward.1} parent=1 // pred_check_branch
      %37 = sbr.rel (0) target = $region25
    $region24: #{forward.1} parent=1 // pred_region
      _
    $region25: #{forward.1} parent=1 // pred_fallthru
      _
    // Predicated region
    $region26: #{forward.1} parent=1 // pred_check
      _
    $region27: #{forward.1} parent=1 // pred_check_branch
      %39 = sbr.rel (0) target = $region29
    $region28: #{forward.1} parent=1 // pred_region
      _
    $region29: #{forward.1} parent=1 // pred_fallthru
      _
    // Predicated region
    $region30: #{forward.1} parent=1 // pred_check
      _
    $region31: #{forward.1} parent=1 // pred_check_branch
      %41 = sbr.rel (0) target = $region33
    $region32: #{forward.1} parent=1 // pred_region
      %43 = dma.done [#allocation4], 1024
    $region33: #{forward.1} parent=1 // pred_fallthru
      _
    %v44 = vld [vmem:[%s0] sm:$0xff]
    %v45 = vld [vmem:[%s1] sm:$0x7]
    %v46 = vld [vmem:[%s2] sm:$0x1]
    %48 = vset.pattern.permute.xlu0 0
    %49 = vperm.xlu0 %48, %v44
    %v50 = vpop.permute.xlu0 %49
    %v52 = vperm.slane %v45, 0
    %v53 = vmul.f32 %v50, %v52
    %v55 = vperm.slane %v46, 0
    %v57 = vadd.f32 %v55, %v53
    %58 = vset.pattern.permute.xlu0 1
    %59 = vperm.xlu0 %58, %v44
    %v60 = vpop.permute.xlu0 %59
    %v62 = vperm.slane %v45, 1
    %v63 = vmul.f32 %v60, %v62
    %v64 = vadd.f32 %v57, %v63
    %65 = vset.pattern.permute.xlu0 2
    %66 = vperm.xlu0 %65, %v44
    %v67 = vpop.permute.xlu0 %66
    %v69 = vperm.slane %v45, 2
    %v70 = vmul.f32 %v67, %v69
    %v71 = vadd.f32 %v64, %v70
    %v72 = vmax.f32 %v71, 0.0
    %v73 = vld [vmem:[#allocation3] sm:$0xff]
    %v74 = vld [vmem:[#allocation3 + $0x8] sm:$0xff]
    %v75 = vld [vmem:[#allocation3 + $0x10] sm:$0xff]
    %v76 = vld [vmem:[#allocation3 + $0x18] sm:$0xff]
    %v77 = vld [vmem:[#allocation3 + $0x20] sm:$0xff]
    %v78 = vld [vmem:[#allocation3 + $0x28] sm:$0xff]
    %v79 = vld [vmem:[#allocation3 + $0x30] sm:$0xff]
    %v80 = vld [vmem:[#allocation3 + $0x38] sm:$0xff]
    %v81 = vld [vmem:[%s4] sm:$0x1]
    %v83 = vperm.slane %v81, 0
    %vm85 = vcmask 523264
    %v87 = vsel %vm85, %v72, 0
    %89 = vmatpush.msra.mxu0 0.0
    %90 = vmatpush.msra.mxu0 0.0
    %91 = vmatpush.msra.mxu0 0.0
    %92 = vmatpush.msra.mxu0 0.0
    %93 = vmatpush.msra.mxu0 0.0
    %94 = vmatpush.msra.mxu0 0.0
    %95 = vmatpush.msra.mxu0 0.0
    %96 = vmatpush.msra.mxu0 0.0
    %v97 = vand.u32 %v80, 4294901760
    %98 = vmatpush.msra.mxu0 %v97
    %v99 = vand.u32 %v79, 4294901760
    %100 = vmatpush.msra.mxu0 %v99
    %v101 = vand.u32 %v78, 4294901760
    %102 = vmatpush.msra.mxu0 %v101
    %v103 = vand.u32 %v77, 4294901760
    %104 = vmatpush.msra.mxu0 %v103
    %v105 = vand.u32 %v76, 4294901760
    %106 = vmatpush.msra.mxu0 %v105
    %v107 = vand.u32 %v75, 4294901760
    %108 = vmatpush.msra.mxu0 %v107
    %v109 = vand.u32 %v74, 4294901760
    %110 = vmatpush.msra.mxu0 %v109
    %v111 = vand.u32 %v73, 4294901760
    %112 = vmatpush.msra.mxu0 %v111
    %v113 = vand.u32 %v87, 4294901760
    %v114 = vsub.f32 %v87, %v113
    %v115 = vand.u32 %v114, 4294901760
    %v116 = vsub.f32 %v114, %v115
    %v117 = vand.u32 %v116, 4294901760
    %118 = vmatmul.f32.gmra.mxu0 %v117
    %v119 = vpop.f32.mrf.mxu0
    %v120 = vadd.f32 %v83, %v119
    %121 = vdwg.mxu0
    %122 = vmatpush.msra.mxu0 0.0
    %123 = vmatpush.msra.mxu0 0.0
    %124 = vmatpush.msra.mxu0 0.0
    %125 = vmatpush.msra.mxu0 0.0
    %126 = vmatpush.msra.mxu0 0.0
    %127 = vmatpush.msra.mxu0 0.0
    %128 = vmatpush.msra.mxu0 0.0
    %129 = vmatpush.msra.mxu0 0.0
    %v130 = vand.u32 %v80, 4294901760
    %v131 = vsub.f32 %v80, %v130
    %v132 = vand.u32 %v131, 4294901760
    %v133 = vsub.f32 %v131, %v132
    %v134 = vand.u32 %v133, 4294901760
    %135 = vmatpush.msra.mxu0 %v134
    %v136 = vand.u32 %v79, 4294901760
    %v137 = vsub.f32 %v79, %v136
    %v138 = vand.u32 %v137, 4294901760
    %v139 = vsub.f32 %v137, %v138
    %v140 = vand.u32 %v139, 4294901760
    %141 = vmatpush.msra.mxu0 %v140
    %v142 = vand.u32 %v78, 4294901760
    %v143 = vsub.f32 %v78, %v142
    %v144 = vand.u32 %v143, 4294901760
    %v145 = vsub.f32 %v143, %v144
    %v146 = vand.u32 %v145, 4294901760
    %147 = vmatpush.msra.mxu0 %v146
    %v148 = vand.u32 %v77, 4294901760
    %v149 = vsub.f32 %v77, %v148
    %v150 = vand.u32 %v149, 4294901760
    %v151 = vsub.f32 %v149, %v150
    %v152 = vand.u32 %v151, 4294901760
    %153 = vmatpush.msra.mxu0 %v152
    %v154 = vand.u32 %v76, 4294901760
    %v155 = vsub.f32 %v76, %v154
    %v156 = vand.u32 %v155, 4294901760
    %v157 = vsub.f32 %v155, %v156
    %v158 = vand.u32 %v157, 4294901760
    %159 = vmatpush.msra.mxu0 %v158
    %v160 = vand.u32 %v75, 4294901760
    %v161 = vsub.f32 %v75, %v160
    %v162 = vand.u32 %v161, 4294901760
    %v163 = vsub.f32 %v161, %v162
    %v164 = vand.u32 %v163, 4294901760
    %165 = vmatpush.msra.mxu0 %v164
    %v166 = vand.u32 %v74, 4294901760
    %v167 = vsub.f32 %v74, %v166
    %v168 = vand.u32 %v167, 4294901760
    %v169 = vsub.f32 %v167, %v168
    %v170 = vand.u32 %v169, 4294901760
    %171 = vmatpush.msra.mxu0 %v170
    %v172 = vand.u32 %v73, 4294901760
    %v173 = vsub.f32 %v73, %v172
    %v174 = vand.u32 %v173, 4294901760
    %v175 = vsub.f32 %v173, %v174
    %v176 = vand.u32 %v175, 4294901760
    %177 = vmatpush.msra.mxu0 %v176
    %v178 = vand.u32 %v87, 4294901760
    %179 = vmatmul.f32.gmra.mxu0 %v178
    %v180 = vpop.f32.mrf.mxu0
    %v181 = vadd.f32 %v120, %v180
    %182 = vdwg.mxu0
    %183 = vmatpush.msra.mxu0 0.0
    %184 = vmatpush.msra.mxu0 0.0
    %185 = vmatpush.msra.mxu0 0.0
    %186 = vmatpush.msra.mxu0 0.0
    %187 = vmatpush.msra.mxu0 0.0
    %188 = vmatpush.msra.mxu0 0.0
    %189 = vmatpush.msra.mxu0 0.0
    %190 = vmatpush.msra.mxu0 0.0
    %v191 = vand.u32 %v80, 4294901760
    %v192 = vsub.f32 %v80, %v191
    %193 = vmatpush.msra.mxu0 %v192
    %v194 = vand.u32 %v79, 4294901760
    %v195 = vsub.f32 %v79, %v194
    %196 = vmatpush.msra.mxu0 %v195
    %v197 = vand.u32 %v78, 4294901760
    %v198 = vsub.f32 %v78, %v197
    %199 = vmatpush.msra.mxu0 %v198
    %v200 = vand.u32 %v77, 4294901760
    %v201 = vsub.f32 %v77, %v200
    %202 = vmatpush.msra.mxu0 %v201
    %v203 = vand.u32 %v76, 4294901760
    %v204 = vsub.f32 %v76, %v203
    %205 = vmatpush.msra.mxu0 %v204
    %v206 = vand.u32 %v75, 4294901760
    %v207 = vsub.f32 %v75, %v206
    %208 = vmatpush.msra.mxu0 %v207
    %v209 = vand.u32 %v74, 4294901760
    %v210 = vsub.f32 %v74, %v209
    %211 = vmatpush.msra.mxu0 %v210
    %v212 = vand.u32 %v73, 4294901760
    %v213 = vsub.f32 %v73, %v212
    %214 = vmatpush.msra.mxu0 %v213
    %v215 = vand.u32 %v87, 4294901760
    %v216 = vsub.f32 %v87, %v215
    %217 = vmatmul.f32.gmra.mxu0 %v216
    %v218 = vpop.f32.mrf.mxu0
    %v219 = vadd.f32 %v181, %v218
    %220 = vdwg.mxu0
    %221 = vmatpush.msra.mxu0 0.0
    %222 = vmatpush.msra.mxu0 0.0
    %223 = vmatpush.msra.mxu0 0.0
    %224 = vmatpush.msra.mxu0 0.0
    %225 = vmatpush.msra.mxu0 0.0
    %226 = vmatpush.msra.mxu0 0.0
    %227 = vmatpush.msra.mxu0 0.0
    %228 = vmatpush.msra.mxu0 0.0
    %v229 = vand.u32 %v80, 4294901760
    %230 = vmatpush.msra.mxu0 %v229
    %v231 = vand.u32 %v79, 4294901760
    %232 = vmatpush.msra.mxu0 %v231
    %v233 = vand.u32 %v78, 4294901760
    %234 = vmatpush.msra.mxu0 %v233
    %v235 = vand.u32 %v77, 4294901760
    %236 = vmatpush.msra.mxu0 %v235
    %v237 = vand.u32 %v76, 4294901760
    %238 = vmatpush.msra.mxu0 %v237
    %v239 = vand.u32 %v75, 4294901760
    %240 = vmatpush.msra.mxu0 %v239
    %v241 = vand.u32 %v74, 4294901760
    %242 = vmatpush.msra.mxu0 %v241
    %v243 = vand.u32 %v73, 4294901760
    %244 = vmatpush.msra.mxu0 %v243
    %v245 = vand.u32 %v87, 4294901760
    %v246 = vsub.f32 %v87, %v245
    %v247 = vand.u32 %v246, 4294901760
    %248 = vmatmul.f32.gmra.mxu0 %v247
    %v249 = vpop.f32.mrf.mxu0
    %v250 = vadd.f32 %v219, %v249
    %251 = vdwg.mxu0
    %252 = vmatpush.msra.mxu0 0.0
    %253 = vmatpush.msra.mxu0 0.0
    %254 = vmatpush.msra.mxu0 0.0
    %255 = vmatpush.msra.mxu0 0.0
    %256 = vmatpush.msra.mxu0 0.0
    %257 = vmatpush.msra.mxu0 0.0
    %258 = vmatpush.msra.mxu0 0.0
    %259 = vmatpush.msra.mxu0 0.0
    %v260 = vand.u32 %v80, 4294901760
    %v261 = vsub.f32 %v80, %v260
    %v262 = vand.u32 %v261, 4294901760
    %263 = vmatpush.msra.mxu0 %v262
    %v264 = vand.u32 %v79, 4294901760
    %v265 = vsub.f32 %v79, %v264
    %v266 = vand.u32 %v265, 4294901760
    %267 = vmatpush.msra.mxu0 %v266
    %v268 = vand.u32 %v78, 4294901760
    %v269 = vsub.f32 %v78, %v268
    %v270 = vand.u32 %v269, 4294901760
    %271 = vmatpush.msra.mxu0 %v270
    %v272 = vand.u32 %v77, 4294901760
    %v273 = vsub.f32 %v77, %v272
    %v274 = vand.u32 %v273, 4294901760
    %275 = vmatpush.msra.mxu0 %v274
    %v276 = vand.u32 %v76, 4294901760
    %v277 = vsub.f32 %v76, %v276
    %v278 = vand.u32 %v277, 4294901760
    %279 = vmatpush.msra.mxu0 %v278
    %v280 = vand.u32 %v75, 4294901760
    %v281 = vsub.f32 %v75, %v280
    %v282 = vand.u32 %v281, 4294901760
    %283 = vmatpush.msra.mxu0 %v282
    %v284 = vand.u32 %v74, 4294901760
    %v285 = vsub.f32 %v74, %v284
    %v286 = vand.u32 %v285, 4294901760
    %287 = vmatpush.msra.mxu0 %v286
    %v288 = vand.u32 %v73, 4294901760
    %v289 = vsub.f32 %v73, %v288
    %v290 = vand.u32 %v289, 4294901760
    %291 = vmatpush.msra.mxu0 %v290
    %v292 = vand.u32 %v87, 4294901760
    %293 = vmatmul.f32.gmra.mxu0 %v292
    %v294 = vpop.f32.mrf.mxu0
    %v295 = vadd.f32 %v250, %v294
    %296 = vdwg.mxu0
    %297 = vmatpush.msra.mxu0 0.0
    %298 = vmatpush.msra.mxu0 0.0
    %299 = vmatpush.msra.mxu0 0.0
    %300 = vmatpush.msra.mxu0 0.0
    %301 = vmatpush.msra.mxu0 0.0
    %302 = vmatpush.msra.mxu0 0.0
    %303 = vmatpush.msra.mxu0 0.0
    %304 = vmatpush.msra.mxu0 0.0
    %v305 = vand.u32 %v80, 4294901760
    %306 = vmatpush.msra.mxu0 %v305
    %v307 = vand.u32 %v79, 4294901760
    %308 = vmatpush.msra.mxu0 %v307
    %v309 = vand.u32 %v78, 4294901760
    %310 = vmatpush.msra.mxu0 %v309
    %v311 = vand.u32 %v77, 4294901760
    %312 = vmatpush.msra.mxu0 %v311
    %v313 = vand.u32 %v76, 4294901760
    %314 = vmatpush.msra.mxu0 %v313
    %v315 = vand.u32 %v75, 4294901760
    %316 = vmatpush.msra.mxu0 %v315
    %v317 = vand.u32 %v74, 4294901760
    %318 = vmatpush.msra.mxu0 %v317
    %v319 = vand.u32 %v73, 4294901760
    %320 = vmatpush.msra.mxu0 %v319
    %v321 = vand.u32 %v87, 4294901760
    %322 = vmatmul.f32.gmra.mxu0 %v321
    %v323 = vpop.f32.mrf.mxu0
    %v324 = vadd.f32 %v295, %v323
    %325 = vdwg.mxu0
    %v326 = vmax.f32 %v324, 0.0
    %v327 = vld [vmem:[%s5] sm:$0x1]
    %v328 = vld [vmem:[#allocation2] sm:$0x1]
    %v330 = vperm.slane %v327, 0
    %v332 = vmul.f32 %v326, %v330
    %v333 = vsel %vm85, %v332, 0.0
    %334 = vadd.xlane.f32.xlu0 %v333
    %v335 = vpop.xlane.xlu0 %334
    %v337 = vperm.slane %v328, 0
    %v339 = vadd.f32 %v335, %v337
    %vm340 = vcmask 7168
    %341 = vst.msk [vmem:[%s7] sm:$0xff] %vm340, %v339
    // Predicated region
    $region34: #{forward.1} parent=1 // pred_check
      _
    $region35: #{forward.1} parent=1 // pred_check_branch
      %343 = sbr.rel (0) target = $region37
    $region36: #{forward.1} parent=1 // pred_region
      _
    $region37: #{forward.1} parent=1 // pred_fallthru
      _
    // Predicated region
    $region38: #{forward.1} parent=1 // pred_check
      _
    $region39: #{forward.1} parent=1 // pred_check_branch
      %345 = sbr.rel (0) target = $region41
    $region40: #{forward.1} parent=1 // pred_region
      _
    $region41: #{forward.1} parent=1 // pred_fallthru
      _
    %346 = vsyncpa [#allocation4], 1

</llo_original>
